<compile_context>
chip_gen: v7x
topology: tpu7x:2x2x1
jax: 0.10.0
libtpu: 0.0.40
codegen_flags: <defaults>
</compile_context>

<pallas_src>
import jax
import jax.numpy as jnp
from jax.experimental import pallas as pl
from jax.experimental.pallas import tpu as pltpu

LANE = 128


def _round_up(v, m):
    return (v + m - 1) // m * m


def _pad_to(a, shape, dtype):
    a = a.astype(dtype)
    if tuple(a.shape) == tuple(shape):
        return a
    return jnp.pad(a, [(0, s - d) for d, s in zip(a.shape, shape)])


# ----------------------------------------------------------------------------
# Tiled, pipelined matmul + bias (+ optional ReLU):  y = [relu](x @ w + b)
# bf16 MXU inputs, f32 accumulation/epilogue. Used for the feature extractor.
# ----------------------------------------------------------------------------
def _make_matmul_bias_kernel(relu):
    def kernel(x_ref, w_ref, b_ref, o_ref, acc_ref):
        k = pl.program_id(2)

        @pl.when(k == 0)
        def _():
            acc_ref[...] = jnp.zeros_like(acc_ref)

        acc_ref[...] += jnp.dot(x_ref[...], w_ref[...],
                                preferred_element_type=jnp.float32)

        @pl.when(k == pl.num_programs(2) - 1)
        def _():
            out = acc_ref[...] + b_ref[...]
            if relu:
                out = jnp.maximum(out, 0.0)
            o_ref[...] = out.astype(o_ref.dtype)

    return kernel


def tiled_matmul_bias(x, w, b, *, relu=False, tm=128, tn=256, tk=256,
                      out_dtype=jnp.float32):
    """x: (M, K), w: (K, N), b: (N,).  Returns (M, N) in out_dtype."""
    M, K = x.shape
    K2, N = w.shape
    assert K == K2
    tm = min(tm, _round_up(M, 8))
    tn = min(tn, _round_up(N, LANE))
    tk = min(tk, _round_up(K, LANE))
    Mp, Kp, Np = _round_up(M, tm), _round_up(K, tk), _round_up(N, tn)

    xp = _pad_to(x, (Mp, Kp), jnp.bfloat16)             # bf16 MXU inputs
    wp = _pad_to(w, (Kp, Np), jnp.bfloat16)
    bp = _pad_to(b.reshape(1, N), (1, Np), jnp.float32)

    grid = (Mp // tm, Np // tn, Kp // tk)
    out = pl.pallas_call(
        _make_matmul_bias_kernel(relu),
        out_shape=jax.ShapeDtypeStruct((Mp, Np), out_dtype),
        grid_spec=pltpu.PrefetchScalarGridSpec(
            num_scalar_prefetch=0,
            grid=grid,
            in_specs=[
                pl.BlockSpec((tm, tk), lambda i, j, k: (i, k)),
                pl.BlockSpec((tk, tn), lambda i, j, k: (k, j)),
                pl.BlockSpec((1, tn), lambda i, j, k: (0, j)),
            ],
            out_specs=pl.BlockSpec((tm, tn), lambda i, j, k: (i, j)),
            scratch_shapes=[pltpu.VMEM((tm, tn), jnp.float32)],
        ),
        compiler_params=pltpu.CompilerParams(
            dimension_semantics=("parallel", "parallel", "arbitrary"),
            vmem_limit_bytes=32 * 1024 * 1024,
        ),
    )(xp, wp, bp)
    return out[:M, :N]


# ----------------------------------------------------------------------------
# Fused TCN TemporalBlock kernel.
# conv1 -> chomp -> relu -> (dropout=id) -> conv2 -> chomp -> relu -> (dropout=id)
# residual (identity or 1x1 conv), final relu — all in one pallas_call.
# Activations stay VMEM-resident; causal taps built in-kernel.
# ----------------------------------------------------------------------------
def _causal_tap(x, shift, T):
    """Causal time shift on a (N*T, C) row-major activation: row (n,t) reads
    (n, t-shift), zero if t-shift < 0."""
    if shift == 0:
        return x
    if shift >= T:
        return jnp.zeros_like(x)
    rolled = pltpu.roll(x, shift=shift, axis=0)          # row r <- row r-shift
    t_idx = jax.lax.broadcasted_iota(jnp.int32, x.shape, 0) % T
    return jnp.where(t_idx >= shift, rolled, jnp.zeros_like(x))


def _make_tcn_block_kernel(K, dilation, T, has_downsample):
    def kernel(x_ref, w1_ref, b1_ref, w2_ref, b2_ref, *rest):
        if has_downsample:
            wd_ref, bd_ref, o_ref = rest
        else:
            (o_ref,) = rest

        x = x_ref[...].astype(jnp.float32)

        def dilated_conv(inp, w_ref, b_ref):
            # K taps concatenated along the contraction axis -> single MXU matmul.
            taps = [_causal_tap(inp, (K - 1 - k) * dilation, T) for k in range(K)]
            xt = taps[0] if K == 1 else jnp.concatenate(taps, axis=1)
            out = jnp.dot(xt.astype(jnp.bfloat16), w_ref[...],
                          preferred_element_type=jnp.float32)
            return out + b_ref[...]

        h = jnp.maximum(dilated_conv(x, w1_ref, b1_ref), 0.0)   # conv1 + relu
        y = jnp.maximum(dilated_conv(h, w2_ref, b2_ref), 0.0)   # conv2 + relu
        if has_downsample:                                      # 1x1 residual conv
            res = jnp.dot(x.astype(jnp.bfloat16), wd_ref[...],
                          preferred_element_type=jnp.float32) + bd_ref[...]
        else:
            res = x
        o_ref[...] = jnp.maximum(y + res, 0.0).astype(o_ref.dtype)

    return kernel


def tcn_block(x, p, *, kernel_size, T):
    """x: (N*T, Cin_pad) f32 -> (N*T, Cout_pad) f32, one pallas_call per block."""
    M, _ = x.shape
    c_pad = p["w1"].shape[-1]
    has_ds = "wd" in p
    args = [x, p["w1"], p["b1"], p["w2"], p["b2"]]
    if has_ds:
        args += [p["wd"], p["bd"]]
    vmem = pl.BlockSpec(memory_space=pltpu.MemorySpace.VMEM)
    return pl.pallas_call(
        _make_tcn_block_kernel(kernel_size, p["dilation"], T, has_ds),
        out_shape=jax.ShapeDtypeStruct((M, c_pad), jnp.float32),
        in_specs=[vmem] * len(args),
        out_specs=vmem,
        compiler_params=pltpu.CompilerParams(vmem_limit_bytes=32 * 1024 * 1024),
    )(*args)


# ----------------------------------------------------------------------------
# Full forward: feature extractor -> TCN -> FinalFC on the flattened output
# ----------------------------------------------------------------------------
def temporal_spatial_forward(params, x, *, kernel_size, embedding_size,
                             numplants, batch_size):
    # x: (N, T, H, W) greyscale image sequences
    N, T, H, W = x.shape
    rgb = jnp.broadcast_to(x[:, :, None, :, :], (N, T, 3, H, W))    # greyscale_to_RGB
    frames = rgb.reshape(N * T, 3 * H * W)

    # TODO(synk): the pretrained Inception-v3 backbone cannot be loaded in-script;
    # it is replaced by a deterministic linear projection of each frame to 2048-d.
    feats = tiled_matmul_bias(frames, params["feat_w"], params["feat_b"])  # (N*T, 2048)

    # Pad input channels to the lane-dense width used by the first TCN block.
    cin_pad = params["tcn"][0]["w1"].shape[0] // kernel_size
    h = _pad_to(feats, (N * T, cin_pad), jnp.float32)

    for layer in params["tcn"]:
        h = tcn_block(h, layer, kernel_size=kernel_size, T=T)      # (N*T, c_pad)

    h = h[:, :embedding_size]                                      # drop lane padding

    # FinalFC on the flattened (N, T, C) TCN output (outputs.view(-1)); these are
    # 1-row GEMVs, so plain XLA is cheaper than a pallas_call (perf feedback).
    assert N * T == numplants * batch_size, "FinalFC input size mismatch"
    assert embedding_size == N * T, "FinalFC output must reshape to (N, T)"
    v = h.reshape(-1)
    v = jnp.maximum(v @ params["fc1_w"] + params["fc1_b"], 0.0)
    v = jnp.maximum(v @ params["fc2_w"] + params["fc2_b"], 0.0)
    return v.reshape(N, T)                                         # .view(*outputs.shape[:2])


# ----------------------------------------------------------------------------
# Deterministic parameter init (shapes follow the PyTorch module's __init__).
# TCN channel counts are zero-padded to 128 lanes; conv weights are stored
# pre-flattened along the contraction axis as (K*Cin_pad, Cout_pad) bf16.
# ----------------------------------------------------------------------------
def init_params(key, *, H, W, feat_dim, num_levels, num_hidden, embedding_size,
                kernel_size, numplants, batch_size):
    keys = iter(jax.random.split(key, 64))

    def dense(shape):
        return 0.05 * jax.random.normal(next(keys), shape, jnp.float32)

    params = {}
    in_dim = 3 * H * W
    params["feat_w"] = dense((in_dim, feat_dim)).astype(jnp.bfloat16)
    params["feat_b"] = dense((feat_dim,))

    channels = [num_hidden] * (num_levels - 1) + [embedding_size]
    K = kernel_size
    tcn = []
    c_prev, c_prev_pad = feat_dim, _round_up(feat_dim, LANE)
    for i, c in enumerate(channels):
        c_pad = _round_up(c, LANE)
        w1 = jnp.zeros((K, c_prev_pad, c_pad), jnp.float32)
        w1 = w1.at[:, :c_prev, :c].set(dense((K, c_prev, c)))
        w2 = jnp.zeros((K, c_pad, c_pad), jnp.float32)
        w2 = w2.at[:, :c, :c].set(dense((K, c, c)))
        layer = {
            "dilation": 2 ** i,
            "w1": w1.reshape(K * c_prev_pad, c_pad).astype(jnp.bfloat16),
            "b1": jnp.zeros((1, c_pad), jnp.float32).at[:, :c].set(dense((1, c))),
            "w2": w2.reshape(K * c_pad, c_pad).astype(jnp.bfloat16),
            "b2": jnp.zeros((1, c_pad), jnp.float32).at[:, :c].set(dense((1, c))),
        }
        if c_prev != c:   # 1x1 conv on the residual branch when channel counts differ
            wd = jnp.zeros((c_prev_pad, c_pad), jnp.float32)
            wd = wd.at[:c_prev, :c].set(dense((c_prev, c)))
            layer["wd"] = wd.astype(jnp.bfloat16)
            layer["bd"] = jnp.zeros((1, c_pad), jnp.float32).at[:, :c].set(dense((1, c)))
        tcn.append(layer)
        c_prev, c_prev_pad = c, c_pad
    params["tcn"] = tcn

    fc_in = embedding_size * numplants * batch_size
    fc_mid = embedding_size * numplants
    params["fc1_w"] = dense((fc_in, fc_mid))
    params["fc1_b"] = dense((fc_mid,))
    params["fc2_w"] = dense((fc_mid, embedding_size))
    params["fc2_b"] = dense((embedding_size,))
    return params


if __name__ == "__main__":
    # Module contract: N*T == numplants*batch_size and embedding_size == N*T
    N, T, H, W = 2, 4, 16, 16
    num_levels, num_hidden, kernel_size = 3, 32, 2
    batch_size, numplants = N, T
    embedding_size = N * T            # = 8, required by FinalFC(...).view(N, T)
    feat_dim = 2048                   # Inception-v3 feature width

    key = jax.random.PRNGKey(0)
    kp, kx = jax.random.split(key)
    params = init_params(kp, H=H, W=W, feat_dim=feat_dim, num_levels=num_levels,
                         num_hidden=num_hidden, embedding_size=embedding_size,
                         kernel_size=kernel_size, numplants=numplants,
                         batch_size=batch_size)
    # TODO(synk): dropout layers are identity here (inference semantics).
    x = jax.random.uniform(kx, (N, T, H, W), jnp.float32)

    out = temporal_spatial_forward(params, x, kernel_size=kernel_size,
                                   embedding_size=embedding_size,
                                   numplants=numplants, batch_size=batch_size)
    out = jax.block_until_ready(out)
    assert out.shape == (N, T) and out.dtype == jnp.float32
    print("KERNEL_OK")
</pallas_src>

<mosaic_0001>
module attributes {stable_mosaic.version = 11 : i64} {
  func.func @kernel(%arg0: i32, %arg1: i32, %arg2: i32, %arg3: memref<8x256xbf16, #tpu.memory_space<vmem>>, %arg4: memref<256x256xbf16, #tpu.memory_space<vmem>>, %arg5: memref<1x256xf32, #tpu.memory_space<vmem>>, %arg6: memref<8x256xf32, #tpu.memory_space<vmem>>, %arg7: memref<8x256xf32, #tpu.memory_space<vmem>>) attributes {dimension_semantics = [#tpu.dimension_semantics<parallel>, #tpu.dimension_semantics<parallel>, #tpu.dimension_semantics<arbitrary>], iteration_bounds = array<i64: 1, 8, 3>, scalar_prefetch = 0 : i64, scratch_operands = 1 : i64, tpu.core_type = #tpu.core_type<tc>, window_params = [{transform_indices = @transform_0, window_bounds = array<i64: 8, 256>}, {transform_indices = @transform_1, window_bounds = array<i64: 256, 256>}, {transform_indices = @transform_2, window_bounds = array<i64: 1, 256>}, {transform_indices = @transform_3, window_bounds = array<i64: 8, 256>}]} {
    %c0_i32 = arith.constant 0 : i32
    %0 = arith.cmpi eq, %arg2, %c0_i32 : i32
    %1 = arith.extui %0 : i1 to i32
    %c0_i32_0 = arith.constant 0 : i32
    %2 = arith.cmpi ne, %1, %c0_i32_0 : i32
    scf.if %2 {
      %cst_9 = arith.constant 0.000000e+00 : f32
      %12 = vector.broadcast %cst_9 : f32 to vector<8x256xf32>
      %c0_10 = arith.constant 0 : index
      %c0_11 = arith.constant 0 : index
      %13 = vector.load %arg7[%c0_10, %c0_11] : memref<8x256xf32, #tpu.memory_space<vmem>>, vector<8x256xf32>
      tpu.vector_store %arg7[%c0_10, %c0_11], %12 {strides = array<i32>} : memref<8x256xf32, #tpu.memory_space<vmem>>, vector<8x256xf32>,
    } else {
    }
    %c0 = arith.constant 0 : index
    %c0_1 = arith.constant 0 : index
    %3 = vector.load %arg7[%c0, %c0_1] : memref<8x256xf32, #tpu.memory_space<vmem>>, vector<8x256xf32>
    %c0_2 = arith.constant 0 : index
    %c0_3 = arith.constant 0 : index
    %4 = vector.load %arg3[%c0_2, %c0_3] : memref<8x256xbf16, #tpu.memory_space<vmem>>, vector<8x256xbf16>
    %c0_4 = arith.constant 0 : index
    %c0_5 = arith.constant 0 : index
    %5 = vector.load %arg4[%c0_4, %c0_5] : memref<256x256xbf16, #tpu.memory_space<vmem>>, vector<256x256xbf16>
    %cst = arith.constant dense<0.000000e+00> : vector<8x256xf32>
    %6 = tpu.matmul %4, %5, %cst {dimension_numbers = #tpu.dot_dimension_numbers<[1], [0], [0], [1], [0, 0, 1, 1], [], []>} : vector<8x256xbf16>, vector<256x256xbf16>, vector<8x256xf32> -> vector<8x256xf32>
    %7 = arith.addf %3, %6 : vector<8x256xf32>
    %c0_6 = arith.constant 0 : index
    %c0_7 = arith.constant 0 : index
    %8 = vector.load %arg7[%c0_6, %c0_7] : memref<8x256xf32, #tpu.memory_space<vmem>>, vector<8x256xf32>
    tpu.vector_store %arg7[%c0_6, %c0_7], %7 {strides = array<i32>} : memref<8x256xf32, #tpu.memory_space<vmem>>, vector<8x256xf32>,
    %c2_i32 = arith.constant 2 : i32
    %9 = arith.cmpi eq, %arg2, %c2_i32 : i32
    %10 = arith.extui %9 : i1 to i32
    %c0_i32_8 = arith.constant 0 : i32
    %11 = arith.cmpi ne, %10, %c0_i32_8 : i32
    scf.if %11 {
      %c0_9 = arith.constant 0 : index
      %c0_10 = arith.constant 0 : index
      %12 = vector.load %arg7[%c0_9, %c0_10] : memref<8x256xf32, #tpu.memory_space<vmem>>, vector<8x256xf32>
      %c0_11 = arith.constant 0 : index
      %c0_12 = arith.constant 0 : index
      %13 = vector.load %arg5[%c0_11, %c0_12] : memref<1x256xf32, #tpu.memory_space<vmem>>, vector<1x256xf32>
      %14 = vector.broadcast %13 : vector<1x256xf32> to vector<8x256xf32>
      %15 = arith.addf %12, %14 : vector<8x256xf32>
      %c0_13 = arith.constant 0 : index
      %c0_14 = arith.constant 0 : index
      %16 = vector.load %arg6[%c0_13, %c0_14] : memref<8x256xf32, #tpu.memory_space<vmem>>, vector<8x256xf32>
      tpu.vector_store %arg6[%c0_13, %c0_14], %15 {strides = array<i32>} : memref<8x256xf32, #tpu.memory_space<vmem>>, vector<8x256xf32>,
    } else {
    }
    return
  }
  func.func @transform_0(%arg0: i32, %arg1: i32, %arg2: i32) -> (i32, i32) {
    %c0_i32 = arith.constant 0 : i32
    return %arg0, %arg2 : i32, i32
  }
  func.func @transform_1(%arg0: i32, %arg1: i32, %arg2: i32) -> (i32, i32) {
    %c0_i32 = arith.constant 0 : i32
    return %arg2, %arg1 : i32, i32
  }
  func.func @transform_2(%arg0: i32, %arg1: i32, %arg2: i32) -> (i32, i32) {
    %c0_i32 = arith.constant 0 : i32
    %c0_i32_0 = arith.constant 0 : i32
    return %c0_i32, %arg1 : i32, i32
  }
  func.func @transform_3(%arg0: i32, %arg1: i32, %arg2: i32) -> (i32, i32) {
    %c0_i32 = arith.constant 0 : i32
    return %arg0, %arg1 : i32, i32
  }
}

</mosaic_0001>

<llo_original>
// kernel: tpu_custom_call.1
$region0: #{tpu_custom_call.1}
  #allocation0 [shape = 'u32[]', space=smem, size = 0x4, offset = 0x4, fixed_abs, tag = 'smem constant byte address 0x4 - core index']
  #allocation1 [shape = 'u32[144,128]{1,0:T(1,128)}', space=vmem, size = 0x12000, scoped, tag = 'internal scratch']
  #allocation2 [shape = 'f32[8,256]{1,0:T(8,128)}', space=vmem, size = 0x2000, scoped, tag = 'scratch operand']
  %s0 = inlined_call_operand.hbm [shape: bf16[8,768], index: 0, kind: input, shape index: {}]
  %s1 = inlined_call_operand.hbm [shape: bf16[768,2048], index: 1, kind: input, shape index: {}]
  %s2 = inlined_call_operand.hbm [shape: f32[1,2048], index: 2, kind: input, shape index: {}]
  %s3 = inlined_call_operand.hbm [shape: f32[8,2048], index: 3, kind: output, shape index: {}]
  %s4 = sld [smem:[#allocation0]]
  $region65: #{tpu_custom_call.1} parent=0
    _
  %s6 = ssub.s32 1, %s4
  %s7 = scalar_select 0, %s6, %s4
  $region1: #{tpu_custom_call.1} parent=0
    #allocation3 [shape = 'u8[8192]{0}', space=vmem, size = 0x2000, scoped, tag = 'input window, operand 0']
    #allocation4 [shape = 's32[2]{0}', space=sflag, size = 0x8, scoped, tag = 'scoped memory for tpu_custom_call.1']
    #allocation5 [shape = 's32[2]{0}', space=sflag, size = 0x8, scoped, tag = 'scoped memory for tpu_custom_call.1']
    #allocation6 [shape = 'u8[262144]{0}', space=vmem, size = 0x40000, scoped, tag = 'input window, operand 1']
    #allocation7 [shape = 's32[2]{0}', space=sflag, size = 0x8, scoped, tag = 'scoped memory for tpu_custom_call.1']
    #allocation8 [shape = 'u8[2048]{0}', space=vmem, size = 0x800, scoped, tag = 'input window, operand 2']
    #allocation9 [shape = 'u8[16384]{0}', space=vmem, size = 0x4000, scoped, tag = 'output window, operand 0']
    %8 = vsyncpa [#allocation4], 0
    %s9 = scalar_lea.sflag [#allocation4], 1
    %10 = vsyncpa %s9, 0
    %11 = vsyncpa [#allocation7], 0
    %s12 = scalar_lea.sflag [#allocation7], 1
    %13 = vsyncpa %s12, 0
    %14 = vsyncpa [#allocation5], 0
    %s15 = scalar_lea.sflag [#allocation5], 1
    %16 = vsyncpa %s15, 0
    loop: start=0, step=1, limit=26
    $region2: #{tpu_custom_call.1} parent=1 // loop_pre_header
      _
    $region3: #{tpu_custom_call.1} parent=1 // loop_header
      %s18 = sphi 0, %s22
      %p19 = scmp.ge.s32.totalorder %s18, 26
      %s25 = sphi 0, %s44
      %s26 = sphi 0, %s40
      %s27 = sphi 0, %s36
      %s28 = sphi 0, %s25
      %s29 = sphi 0, %s26
      %s30 = sphi 0, %s27
      %s31 = sphi 0, %s28
      %s32 = sphi 0, %s29
      %s33 = sphi 0, %s30
      %s49 = sphi 0, %s51
      %s52 = sphi 0, %s49
      %s53 = sphi 0, %s52
      %s69 = sphi 0, %s53
      %s77 = sphi 0, %s79
      %s80 = sphi 0, %s77
      %s81 = sphi 0, %s80
      %s97 = sphi 0, %s81
      %s103 = sphi 0, %s105
      %s106 = sphi 0, %s103
      %s107 = sphi 0, %s106
      %s123 = sphi 0, %s107
      %s131 = sphi 0, %s133
      %s134 = sphi 0, %s131
      %s135 = sphi 0, %s134
      %s151 = sphi 0, %s135
    $region4: #{tpu_custom_call.1} parent=1 // loop_header_branch
      %21 = sbr.rel (%p19) target = $region8
    $region5: #{tpu_custom_call.1} parent=1 // loop_body
      %s23 = ssub.s32 %s18, 1
      %s24 = ssub.s32 %s18, 2
      %s34 = sadd.s32 1, %s27
      %p35 = scmp.ge.s32.totalorder %s34, 3
      %s36 = scalar_select %p35, 0, %s34
      %s37 = sadd.s32 1, %s26
      %s38 = scalar_select %p35, %s37, %s26
      %p39 = scmp.ge.s32.totalorder %s38, 8
      %s40 = scalar_select %p39, 0, %s38
      %s41 = sadd.s32 1, %s25
      %s42 = scalar_select %p39, %s41, %s25
      %p43 = scmp.ge.s32.totalorder %s42, 1
      %s44 = scalar_select %p43, 0, %s42
      %s45 = ssub.s32 %s25, %s44
      %s46 = ssub.s32 %s27, %s36
      %s47 = sor.u32 %s45, %s46
      %p48 = scmp.eq.s32.totalorder %s47, 0
      %s50 = sadd.s32 %s49, 1
      %s51 = scalar_select %p48, %s49, %s50
      %p54 = pneg %p48
      %p55 = scmp.eq.s32.totalorder %s18, 23
      %p56 = por %p54, %p55
      %p57 = scmp.ne.s32.totalorder %s49, %s52
      %p58 = scmp.eq.s32.totalorder %s18, 0
      %p59 = por %p57, %p58
      %p60 = scmp.ne.s32.totalorder %s49, %s52
      %p61 = scmp.eq.s32.totalorder %s23, 23
      %p62 = por %p60, %p61
      %p63 = scmp.ne.s32.totalorder %s52, %s53
      %p64 = scmp.eq.s32.totalorder %s23, 0
      %p65 = por %p63, %p64
      %p66 = scmp.ne.s32.totalorder %s52, %s53
      %p67 = scmp.eq.s32.totalorder %s24, 23
      %p68 = por %p66, %p67
      %p70 = scmp.ne.s32.totalorder %s53, %s69
      %p71 = scmp.eq.s32.totalorder %s24, 0
      %p72 = por %p70, %p71
      %s73 = ssub.s32 %s27, %s36
      %s74 = ssub.s32 %s26, %s40
      %s75 = sor.u32 %s73, %s74
      %p76 = scmp.eq.s32.totalorder %s75, 0
      %s78 = sadd.s32 %s77, 1
      %s79 = scalar_select %p76, %s77, %s78
      %p82 = pneg %p76
      %p83 = scmp.eq.s32.totalorder %s18, 23
      %p84 = por %p82, %p83
      %p85 = scmp.ne.s32.totalorder %s77, %s80
      %p86 = scmp.eq.s32.totalorder %s18, 0
      %p87 = por %p85, %p86
      %p88 = scmp.ne.s32.totalorder %s77, %s80
      %p89 = scmp.eq.s32.totalorder %s23, 23
      %p90 = por %p88, %p89
      %p91 = scmp.ne.s32.totalorder %s80, %s81
      %p92 = scmp.eq.s32.totalorder %s23, 0
      %p93 = por %p91, %p92
      %p94 = scmp.ne.s32.totalorder %s80, %s81
      %p95 = scmp.eq.s32.totalorder %s24, 23
      %p96 = por %p94, %p95
      %p98 = scmp.ne.s32.totalorder %s81, %s97
      %p99 = scmp.eq.s32.totalorder %s24, 0
      %p100 = por %p98, %p99
      %s101 = ssub.s32 %s26, %s40
      %p102 = scmp.eq.s32.totalorder %s101, 0
      %s104 = sadd.s32 %s103, 1
      %s105 = scalar_select %p102, %s103, %s104
      %p108 = pneg %p102
      %p109 = scmp.eq.s32.totalorder %s18, 23
      %p110 = por %p108, %p109
      %p111 = scmp.ne.s32.totalorder %s103, %s106
      %p112 = scmp.eq.s32.totalorder %s18, 0
      %p113 = por %p111, %p112
      %p114 = scmp.ne.s32.totalorder %s103, %s106
      %p115 = scmp.eq.s32.totalorder %s23, 23
      %p116 = por %p114, %p115
      %p117 = scmp.ne.s32.totalorder %s106, %s107
      %p118 = scmp.eq.s32.totalorder %s23, 0
      %p119 = por %p117, %p118
      %p120 = scmp.ne.s32.totalorder %s106, %s107
      %p121 = scmp.eq.s32.totalorder %s24, 23
      %p122 = por %p120, %p121
      %p124 = scmp.ne.s32.totalorder %s107, %s123
      %p125 = scmp.eq.s32.totalorder %s24, 0
      %p126 = por %p124, %p125
      %s127 = ssub.s32 %s25, %s44
      %s128 = ssub.s32 %s26, %s40
      %s129 = sor.u32 %s127, %s128
      %p130 = scmp.eq.s32.totalorder %s129, 0
      %s132 = sadd.s32 %s131, 1
      %s133 = scalar_select %p130, %s131, %s132
      %p136 = pneg %p130
      %p137 = scmp.eq.s32.totalorder %s18, 23
      %p138 = por %p136, %p137
      %p139 = scmp.ne.s32.totalorder %s131, %s134
      %p140 = scmp.eq.s32.totalorder %s18, 0
      %p141 = por %p139, %p140
      %p142 = scmp.ne.s32.totalorder %s131, %s134
      %p143 = scmp.eq.s32.totalorder %s23, 23
      %p144 = por %p142, %p143
      %p145 = scmp.ne.s32.totalorder %s134, %s135
      %p146 = scmp.eq.s32.totalorder %s23, 0
      %p147 = por %p145, %p146
      %p148 = scmp.ne.s32.totalorder %s134, %s135
      %p149 = scmp.eq.s32.totalorder %s24, 23
      %p150 = por %p148, %p149
      %p152 = scmp.ne.s32.totalorder %s135, %s151
      %p153 = scmp.eq.s32.totalorder %s24, 0
      %p154 = por %p152, %p153
      %p155 = scmp.le.s32.totalorder 1, %s18
      %p156 = scmp.lt.s32.totalorder %s18, 25
      %p157 = pnand %p155, %p156
      %p158 = pneg %p157
      // Predicated region
      $region9: #{tpu_custom_call.1} parent=5 // pred_check
        _
      $region10: #{tpu_custom_call.1} parent=5 // pred_check_branch
        %160 = sbr.rel (%p157) target = $region12
      $region11: #{tpu_custom_call.1} parent=5 // pred_region
        %s161 = ssub.s32 %s18, 1
      $region12: #{tpu_custom_call.1} parent=5 // pred_fallthru
        _
      %p162 = scmp.lt.s32.totalorder %s18, 24
      // Predicated region
      $region13: #{tpu_custom_call.1} parent=5 // pred_check
        %p163 = pneg %p162
      $region14: #{tpu_custom_call.1} parent=5 // pred_check_branch
        %165 = sbr.rel (%p163) target = $region16
      $region15: #{tpu_custom_call.1} parent=5 // pred_region
        // Predicated region
        $region17: #{tpu_custom_call.1} parent=15 // pred_check
          %p166 = pneg %p59
        $region18: #{tpu_custom_call.1} parent=15 // pred_check_branch
          %168 = sbr.rel (%p166) target = $region20
        $region19: #{tpu_custom_call.1} parent=15 // pred_region
          %s169 = sand.u32 %s49, 1
          %s170 = scalar_lea.sflag [#allocation4], %s169
          %s171 = sand.u32 %s49, 1
          %s172 = smul.addr %s171, 8
          %s173 = scalar_lea.vmem [#allocation3], %s172
          %s174 = smul.u32 2, %s27
          %s176 = ssub.s32 128, 128
          %177 = vsyncadd %s170, %s176
          %s178 = smul.addr %s25, 6
          %s179 = sadd.s32 %s174, %s178
          %s180 = smul.addr %s179, 64
          %s181 = scalar_lea.hbm %s0, %s180
          %s183 = sshll.u32 %s173, 4
          %s184 = int_to_ptr.vmem [resolvable:$true] %s183
          %186 = dma.hbm_to_vmem [thread:$0]  %s181, 128, %s184, %s170
        $region20: #{tpu_custom_call.1} parent=15 // pred_fallthru
          _
        // Predicated region
        $region21: #{tpu_custom_call.1} parent=15 // pred_check
          %p187 = pneg %p87
        $region22: #{tpu_custom_call.1} parent=15 // pred_check_branch
          %189 = sbr.rel (%p187) target = $region24
        $region23: #{tpu_custom_call.1} parent=15 // pred_region
          %s190 = sand.u32 %s18, 1
          %s191 = scalar_lea.sflag [#allocation7], %s190
          %s192 = sand.u32 %s77, 1
          %s193 = smul.addr %s192, 256
          %s194 = scalar_lea.vmem [#allocation6], %s193
          %s195 = smul.u32 32, %s27
          %s196 = smul.u32 2, %s26
          %s198 = ssub.s32 4096, 4096
          %199 = vsyncadd %s191, %s198
          %s200 = smul.addr %s195, 16
          %s201 = sadd.s32 %s196, %s200
          %s202 = smul.addr %s201, 64
          %s203 = scalar_lea.hbm %s1, %s202
          %s204 = sshll.u32 %s194, 4
          %s205 = int_to_ptr.vmem [resolvable:$true] %s204
          %210 = dma.hbm_to_vmem [thread:$0]  %s203, 4096, %s205, %s191, 1024, 128, 8
        $region24: #{tpu_custom_call.1} parent=15 // pred_fallthru
          _
        // Predicated region
        $region25: #{tpu_custom_call.1} parent=15 // pred_check
          %p211 = pneg %p113
        $region26: #{tpu_custom_call.1} parent=15 // pred_check_branch
          %213 = sbr.rel (%p211) target = $region28
        $region27: #{tpu_custom_call.1} parent=15 // pred_region
          %s214 = sand.u32 %s18, 1
          %s215 = scalar_lea.sflag [#allocation7], %s214
          %s216 = sand.u32 %s103, 1
          %s217 = smul.addr %s216, 2
          %s218 = scalar_lea.vmem [#allocation8], %s217
          %s219 = smul.u32 2, %s26
          %s221 = ssub.s32 32, 32
          %222 = vsyncadd %s215, %s221
          %s223 = smul.addr %s219, 16
          %s224 = scalar_lea.hbm %s2, %s223
          %s226 = sshll.u32 %s218, 4
          %s227 = int_to_ptr.vmem [resolvable:$true] %s226
          %229 = dma.hbm_to_vmem [thread:$0]  %s224, 32, %s227, %s215
        $region28: #{tpu_custom_call.1} parent=15 // pred_fallthru
          _
      $region16: #{tpu_custom_call.1} parent=5 // pred_fallthru
        _
      %p230 = scmp.le.s32.totalorder 1, %s18
      %p231 = scmp.lt.s32.totalorder %s18, 25
      %p232 = pnand %p230, %p231
      %p233 = pneg %p232
      // Predicated region
      $region29: #{tpu_custom_call.1} parent=5 // pred_check
        _
      $region30: #{tpu_custom_call.1} parent=5 // pred_check_branch
        %235 = sbr.rel (%p232) target = $region32
      $region31: #{tpu_custom_call.1} parent=5 // pred_region
        %s236 = ssub.s32 %s18, 1
        %s237 = sand.u32 %s52, 1
        %s238 = scalar_lea.sflag [#allocation4], %s237
        %s239 = sand.u32 %s52, 1
        %s240 = smul.addr %s239, 8
        %s241 = scalar_lea.vmem [#allocation3], %s240
        // Predicated region
        $region33: #{tpu_custom_call.1} parent=31 // pred_check
          %p242 = pneg %p65
        $region34: #{tpu_custom_call.1} parent=31 // pred_check_branch
          %244 = sbr.rel (%p242) target = $region36
        $region35: #{tpu_custom_call.1} parent=31 // pred_region
          %245 = dma.done %s238, 128
        $region36: #{tpu_custom_call.1} parent=31 // pred_fallthru
          _
        %s246 = sand.u32 %s23, 1
        %s247 = scalar_lea.sflag [#allocation7], %s246
        %s248 = sand.u32 %s80, 1
        %s249 = smul.addr %s248, 256
        %s250 = scalar_lea.vmem [#allocation6], %s249
        // Predicated region
        $region37: #{tpu_custom_call.1} parent=31 // pred_check
          %p251 = pneg %p93
        $region38: #{tpu_custom_call.1} parent=31 // pred_check_branch
          %253 = sbr.rel (%p251) target = $region40
        $region39: #{tpu_custom_call.1} parent=31 // pred_region
          %254 = dma.done %s247, 4096
        $region40: #{tpu_custom_call.1} parent=31 // pred_fallthru
          _
        %s255 = sand.u32 %s23, 1
        %s256 = scalar_lea.sflag [#allocation7], %s255
        %s257 = sand.u32 %s106, 1
        %s258 = smul.addr %s257, 2
        %s259 = scalar_lea.vmem [#allocation8], %s258
        // Predicated region
        $region41: #{tpu_custom_call.1} parent=31 // pred_check
          %p260 = pneg %p119
        $region42: #{tpu_custom_call.1} parent=31 // pred_check_branch
          %262 = sbr.rel (%p260) target = $region44
        $region43: #{tpu_custom_call.1} parent=31 // pred_region
          %263 = dma.done %s256, 32
        $region44: #{tpu_custom_call.1} parent=31 // pred_fallthru
          _
        %s264 = sand.u32 %s52, 1
        %s265 = scalar_lea.sflag [#allocation4], %s264
        %s266 = sand.u32 %s52, 1
        %s267 = smul.addr %s266, 8
        %s268 = scalar_lea.vmem [#allocation3], %s267
        %p269 = pneg %p65
        %p270 = pneg %p62
        %s271 = sand.u32 %s23, 1
        %s272 = scalar_lea.sflag [#allocation7], %s271
        %s273 = sand.u32 %s80, 1
        %s274 = smul.addr %s273, 256
        %s275 = scalar_lea.vmem [#allocation6], %s274
        %p276 = pneg %p93
        %p277 = pneg %p90
        %s278 = sand.u32 %s23, 1
        %s279 = scalar_lea.sflag [#allocation7], %s278
        %s280 = sand.u32 %s106, 1
        %s281 = smul.addr %s280, 2
        %s282 = scalar_lea.vmem [#allocation8], %s281
        %p283 = pneg %p119
        %p284 = pneg %p116
        %p285 = pneg %p147
        %p286 = pneg %p144
        %s287 = sand.u32 %s134, 1
        %s288 = scalar_lea.sflag [#allocation5], %s287
        %s289 = sand.u32 %s134, 1
        %s290 = smul.addr %s289, 16
        %s291 = scalar_lea.vmem [#allocation9], %s290
        %s292 = smul.u32 2, %s30
        %s293 = smul.u32 32, %s30
        %s294 = smul.u32 2, %s29
        %s295 = smul.u32 2, %s29
        %s296 = smul.u32 2, %s29
        %p297 = scmp.eq.s32.totalorder %s30, 0
        // Predicated region
        $region45: #{tpu_custom_call.1} parent=31 // pred_check
          %p298 = pneg %p297
        $region46: #{tpu_custom_call.1} parent=31 // pred_check_branch
          %300 = sbr.rel (%p298) target = $region48
        $region47: #{tpu_custom_call.1} parent=31 // pred_region
          %301 = vst [vmem:[#allocation2] sm:$0xff] 0.0
          %302 = vst [vmem:[#allocation2 + $0x8] sm:$0xff] 0.0
        $region48: #{tpu_custom_call.1} parent=31 // pred_fallthru
          _
        %v303 = vld [vmem:[#allocation2] sm:$0xff]
        %v304 = vld [vmem:[#allocation2 + $0x8] sm:$0xff]
        %v305 = vld [vmem:[%s241] sm:$0xff]
        %v306 = vld [vmem:[%s250] sm:$0xff]
        %v307 = vld [vmem:[%s250 + $0x8] sm:$0xff]
        %v308 = vld [vmem:[%s250 + $0x10] sm:$0xff]
        %v309 = vld [vmem:[%s250 + $0x18] sm:$0xff]
        %v310 = vld [vmem:[%s250 + $0x20] sm:$0xff]
        %v311 = vld [vmem:[%s250 + $0x28] sm:$0xff]
        %v312 = vld [vmem:[%s250 + $0x30] sm:$0xff]
        %v313 = vld [vmem:[%s250 + $0x38] sm:$0xff]
        %v314 = vld [vmem:[%s250 + $0x40] sm:$0xff]
        %v315 = vld [vmem:[%s250 + $0x48] sm:$0xff]
        %v316 = vld [vmem:[%s250 + $0x50] sm:$0xff]
        %v317 = vld [vmem:[%s250 + $0x58] sm:$0xff]
        %v318 = vld [vmem:[%s250 + $0x60] sm:$0xff]
        %v319 = vld [vmem:[%s250 + $0x68] sm:$0xff]
        %v320 = vld [vmem:[%s250 + $0x70] sm:$0xff]
        %v321 = vld [vmem:[%s250 + $0x78] sm:$0xff]
        %v322 = vld [vmem:[%s250 + $0x80] sm:$0xff]
        %v323 = vld [vmem:[%s250 + $0x88] sm:$0xff]
        %v324 = vld [vmem:[%s250 + $0x90] sm:$0xff]
        %v325 = vld [vmem:[%s250 + $0x98] sm:$0xff]
        %v326 = vld [vmem:[%s250 + $0xa0] sm:$0xff]
        %v327 = vld [vmem:[%s250 + $0xa8] sm:$0xff]
        %v328 = vld [vmem:[%s250 + $0xb0] sm:$0xff]
        %v329 = vld [vmem:[%s250 + $0xb8] sm:$0xff]
        %v330 = vld [vmem:[%s250 + $0xc0] sm:$0xff]
        %v331 = vld [vmem:[%s250 + $0xc8] sm:$0xff]
        %v332 = vld [vmem:[%s250 + $0xd0] sm:$0xff]
        %v333 = vld [vmem:[%s250 + $0xd8] sm:$0xff]
        %v334 = vld [vmem:[%s250 + $0xe0] sm:$0xff]
        %v335 = vld [vmem:[%s250 + $0xe8] sm:$0xff]
        %v336 = vld [vmem:[%s250 + $0xf0] sm:$0xff]
        %v337 = vld [vmem:[%s250 + $0xf8] sm:$0xff]
        %v339 = vunpack.c.l.b16 %v305
        %v340 = vunpack.c.h.b16 %v305
        %v341 = vpack.c.b16 %v339, %v339
        %v342 = vpack.c.b16 %v340, %v340
        %v377 = vunpack.c.l.b16 %v306
        %v378 = vunpack.c.h.b16 %v306
        %v379 = vunpack.c.l.b16 %v307
        %v380 = vunpack.c.h.b16 %v307
        %v381 = vunpack.c.l.b16 %v308
        %v382 = vunpack.c.h.b16 %v308
        %v383 = vunpack.c.l.b16 %v309
        %v384 = vunpack.c.h.b16 %v309
        %v385 = vunpack.c.l.b16 %v310
        %v386 = vunpack.c.h.b16 %v310
        %v387 = vunpack.c.l.b16 %v311
        %v388 = vunpack.c.h.b16 %v311
        %v389 = vunpack.c.l.b16 %v312
        %v390 = vunpack.c.h.b16 %v312
        %v391 = vunpack.c.l.b16 %v313
        %v392 = vunpack.c.h.b16 %v313
        %v393 = vunpack.c.l.b16 %v314
        %v394 = vunpack.c.h.b16 %v314
        %v395 = vunpack.c.l.b16 %v315
        %v396 = vunpack.c.h.b16 %v315
        %v397 = vunpack.c.l.b16 %v316
        %v398 = vunpack.c.h.b16 %v316
        %v399 = vunpack.c.l.b16 %v317
        %v400 = vunpack.c.h.b16 %v317
        %v401 = vunpack.c.l.b16 %v318
        %v402 = vunpack.c.h.b16 %v318
        %v403 = vunpack.c.l.b16 %v319
        %v404 = vunpack.c.h.b16 %v319
        %v405 = vunpack.c.l.b16 %v320
        %v406 = vunpack.c.h.b16 %v320
        %v407 = vunpack.c.l.b16 %v321
        %v408 = vunpack.c.h.b16 %v321
        %v409 = vunpack.c.l.b16 %v322
        %v410 = vunpack.c.h.b16 %v322
        %v411 = vunpack.c.l.b16 %v323
        %v412 = vunpack.c.h.b16 %v323
        %v413 = vunpack.c.l.b16 %v324
        %v414 = vunpack.c.h.b16 %v324
        %v415 = vunpack.c.l.b16 %v325
        %v416 = vunpack.c.h.b16 %v325
        %v417 = vunpack.c.l.b16 %v326
        %v418 = vunpack.c.h.b16 %v326
        %v419 = vunpack.c.l.b16 %v327
        %v420 = vunpack.c.h.b16 %v327
        %v421 = vunpack.c.l.b16 %v328
        %v422 = vunpack.c.h.b16 %v328
        %v423 = vunpack.c.l.b16 %v329
        %v424 = vunpack.c.h.b16 %v329
        %v425 = vunpack.c.l.b16 %v330
        %v426 = vunpack.c.h.b16 %v330
        %v427 = vunpack.c.l.b16 %v331
        %v428 = vunpack.c.h.b16 %v331
        %v429 = vunpack.c.l.b16 %v332
        %v430 = vunpack.c.h.b16 %v332
        %v431 = vunpack.c.l.b16 %v333
        %v432 = vunpack.c.h.b16 %v333
        %v433 = vunpack.c.l.b16 %v334
        %v434 = vunpack.c.h.b16 %v334
        %v435 = vunpack.c.l.b16 %v335
        %v436 = vunpack.c.h.b16 %v335
        %v437 = vunpack.c.l.b16 %v336
        %v438 = vunpack.c.h.b16 %v336
        %v439 = vunpack.c.l.b16 %v337
        %v440 = vunpack.c.h.b16 %v337
        %v441 = vpack.c.b16 %v379, %v377
        %v442 = vpack.c.b16 %v380, %v378
        %v443 = vpack.c.b16 %v383, %v381
        %v444 = vpack.c.b16 %v384, %v382
        %v445 = vpack.c.b16 %v387, %v385
        %v446 = vpack.c.b16 %v388, %v386
        %v447 = vpack.c.b16 %v391, %v389
        %v448 = vpack.c.b16 %v392, %v390
        %v449 = vpack.c.b16 %v395, %v393
        %v450 = vpack.c.b16 %v396, %v394
        %v451 = vpack.c.b16 %v399, %v397
        %v452 = vpack.c.b16 %v400, %v398
        %v453 = vpack.c.b16 %v403, %v401
        %v454 = vpack.c.b16 %v404, %v402
        %v455 = vpack.c.b16 %v407, %v405
        %v456 = vpack.c.b16 %v408, %v406
        %v457 = vpack.c.b16 %v411, %v409
        %v458 = vpack.c.b16 %v412, %v410
        %v459 = vpack.c.b16 %v415, %v413
        %v460 = vpack.c.b16 %v416, %v414
        %v461 = vpack.c.b16 %v419, %v417
        %v462 = vpack.c.b16 %v420, %v418
        %v463 = vpack.c.b16 %v423, %v421
        %v464 = vpack.c.b16 %v424, %v422
        %v465 = vpack.c.b16 %v427, %v425
        %v466 = vpack.c.b16 %v428, %v426
        %v467 = vpack.c.b16 %v431, %v429
        %v468 = vpack.c.b16 %v432, %v430
        %v469 = vpack.c.b16 %v435, %v433
        %v470 = vpack.c.b16 %v436, %v434
        %v471 = vpack.c.b16 %v439, %v437
        %v472 = vpack.c.b16 %v440, %v438
        %505 = vmatprep.subr.bf16.mxu0 %v442
        %506 = vmatpush1.bf16.msra.mxu0 %v441
        %507 = vmatprep.subr.bf16.mxu0 %v444
        %508 = vmatpush1.bf16.msra.mxu0 %v443
        %509 = vmatprep.subr.bf16.mxu0 %v446
        %510 = vmatpush1.bf16.msra.mxu0 %v445
        %511 = vmatprep.subr.bf16.mxu0 %v448
        %512 = vmatpush1.bf16.msra.mxu0 %v447
        %513 = vmatprep.subr.bf16.mxu0 %v450
        %514 = vmatpush1.bf16.msra.mxu0 %v449
        %515 = vmatprep.subr.bf16.mxu0 %v452
        %516 = vmatpush1.bf16.msra.mxu0 %v451
        %517 = vmatprep.subr.bf16.mxu0 %v454
        %518 = vmatpush1.bf16.msra.mxu0 %v453
        %519 = vmatprep.subr.bf16.mxu0 %v456
        %520 = vmatpush1.bf16.msra.mxu0 %v455
        %521 = vmatprep.subr.bf16.mxu0 %v458
        %522 = vmatpush1.bf16.msra.mxu0 %v457
        %523 = vmatprep.subr.bf16.mxu0 %v460
        %524 = vmatpush1.bf16.msra.mxu0 %v459
        %525 = vmatprep.subr.bf16.mxu0 %v462
        %526 = vmatpush1.bf16.msra.mxu0 %v461
        %527 = vmatprep.subr.bf16.mxu0 %v464
        %528 = vmatpush1.bf16.msra.mxu0 %v463
        %529 = vmatprep.subr.bf16.mxu0 %v466
        %530 = vmatpush1.bf16.msra.mxu0 %v465
        %531 = vmatprep.subr.bf16.mxu0 %v468
        %532 = vmatpush1.bf16.msra.mxu0 %v467
        %533 = vmatprep.subr.bf16.mxu0 %v470
        %534 = vmatpush1.bf16.msra.mxu0 %v469
        %535 = vmatprep.subr.bf16.mxu0 %v472
        %536 = vmatpush1.bf16.msra.mxu0 %v471
        %537 = vmatprep.mubr.bf16.mxu0 %v342
        %538 = vmatmul.mubr.bf16.gmra.mrb[0].mxu0 %v341
        %v539 = vpop.f32.mrb[0].mxu0
        %v540 = vadd.f32 0.0, %v539
        %v541 = vpop.f32.mrb[0].mxu0
        %v542 = vadd.f32 0.0, %v541
        %v543 = vpop.f32.mrb[0].mxu0
        %v544 = vpop.f32.mrb[0].mxu0
        %545 = vdwg.mxu0
        %v546 = vadd.f32 %v303, %v540
        %v547 = vadd.f32 %v304, %v542
        %548 = vst [vmem:[#allocation2] sm:$0xff] %v546
        %549 = vst [vmem:[#allocation2 + $0x8] sm:$0xff] %v547
        %p550 = scmp.eq.s32.totalorder %s30, 2
        // Predicated region
        $region49: #{tpu_custom_call.1} parent=31 // pred_check
          %p551 = pneg %p550
        $region50: #{tpu_custom_call.1} parent=31 // pred_check_branch
          %553 = sbr.rel (%p551) target = $region52
        $region51: #{tpu_custom_call.1} parent=31 // pred_region
          %v554 = vld [vmem:[#allocation2] sm:$0xff]
          %v555 = vld [vmem:[#allocation2 + $0x8] sm:$0xff]
          %v556 = vld [vmem:[%s259] sm:$0x3]
          %v558 = vlaneseq
          %v559 = vshrl.u32 %v558, 7
          %v560 = vsub.s32 0, %v559
          %v561 = vrot.slane %v556, %v560
          %v562 = vlaneseq
          %v563 = vshrl.u32 %v562, 7
          %v564 = vsub.s32 1, %v563
          %v565 = vrot.slane %v556, %v564
          %v568 = vadd.f32 %v554, %v561
          %v569 = vadd.f32 %v555, %v565
          %570 = vst [vmem:[%s291] sm:$0xff] %v568
          %571 = vst [vmem:[%s291 + $0x8] sm:$0xff] %v569
        $region52: #{tpu_custom_call.1} parent=31 // pred_fallthru
          _
        %s572 = sand.u32 %s134, 1
        %s573 = scalar_lea.sflag [#allocation5], %s572
        %s574 = sand.u32 %s134, 1
        %s575 = smul.addr %s574, 16
        %s576 = scalar_lea.vmem [#allocation9], %s575
        // Predicated region
        $region53: #{tpu_custom_call.1} parent=31 // pred_check
          %p577 = pneg %p144
        $region54: #{tpu_custom_call.1} parent=31 // pred_check_branch
          %579 = sbr.rel (%p577) target = $region56
        $region55: #{tpu_custom_call.1} parent=31 // pred_region
          %s580 = smul.u32 2, %s29
          %s582 = ssub.s32 256, 256
          %583 = vsyncadd %s573, %s582
          %s584 = smul.addr %s28, 16
          %s585 = sadd.s32 %s580, %s584
          %s586 = smul.addr %s585, 128
          %s587 = scalar_lea.hbm %s3, %s586
          %s589 = sshll.u32 %s576, 4
          %s590 = int_to_ptr.vmem [resolvable:$true] %s589
          %592 = dma.vmem_to_hbm [thread:$0]  %s590, 256, %s587, %s573
        $region56: #{tpu_custom_call.1} parent=31 // pred_fallthru
          _
      $region32: #{tpu_custom_call.1} parent=5 // pred_fallthru
        _
      %p593 = scmp.le.s32.totalorder 2, %s18
      // Predicated region
      $region57: #{tpu_custom_call.1} parent=5 // pred_check
        %p594 = pneg %p593
      $region58: #{tpu_custom_call.1} parent=5 // pred_check_branch
        %596 = sbr.rel (%p594) target = $region60
      $region59: #{tpu_custom_call.1} parent=5 // pred_region
        %s597 = ssub.s32 %s18, 2
        // Predicated region
        $region61: #{tpu_custom_call.1} parent=59 // pred_check
          %p598 = pneg %p150
        $region62: #{tpu_custom_call.1} parent=59 // pred_check_branch
          %600 = sbr.rel (%p598) target = $region64
        $region63: #{tpu_custom_call.1} parent=59 // pred_region
          %s601 = sand.u32 %s135, 1
          %s602 = scalar_lea.sflag [#allocation5], %s601
          %s603 = sand.u32 %s135, 1
          %s604 = smul.addr %s603, 16
          %s605 = scalar_lea.vmem [#allocation9], %s604
          %606 = dma.done %s602, 256
        $region64: #{tpu_custom_call.1} parent=59 // pred_fallthru
          _
      $region60: #{tpu_custom_call.1} parent=5 // pred_fallthru
        _
    $region6: #{tpu_custom_call.1} parent=1 // loop_footer
      %s22 = sadd.s32 1, %s18
    $region7: #{tpu_custom_call.1} parent=1 // loop_footer_branch
      %17 = sbr.rel target = $region3
    $region8: #{tpu_custom_call.1} parent=1 // loop_exit
      _
    %607 = vsyncpa [#allocation4], 1
    %s608 = scalar_lea.sflag [#allocation4], 1
    %609 = vsyncpa %s608, 1
    %610 = vsyncpa [#allocation7], 1
    %s611 = scalar_lea.sflag [#allocation7], 1
    %612 = vsyncpa %s611, 1
    %613 = vsyncpa [#allocation5], 1
    %s614 = scalar_lea.sflag [#allocation5], 1
    %615 = vsyncpa %s614, 1

</llo_original>
